<compile_context>
chip_gen: v6e
topology: v6e:2x2x1
jax: 0.10.0
libtpu: 0.0.40
codegen_flags: <defaults>
</compile_context>

<pallas_src>
import functools

import jax
import jax.numpy as jnp
from jax import lax
from jax.experimental import pallas as pl
from jax.experimental.pallas import tpu as pltpu


_LANE = 128
_TM_MAX = 8192  # target pixels per tile (columns of the transposed layout)


def _round_up(x, m):
    return (x + m - 1) // m * m


def _soft_quantizer_kernel(xT_ref, w_ref, wsq_ref, g_ref,
                           probsT_ref, softqT_ref, partial_ref,
                           *, inv_tau, tm, m_total, m_padded):
    """One lane-dense tile: columns = flattened pixels (m), rows = D or N."""
    i = pl.program_id(0)

    xT = xT_ref[...]                          # (D, tm) f32
    w = w_ref[...]                            # (N, D)  f32, VMEM-resident
    g = g_ref[...]                            # (N, tm) f32 Gumbel(0,1)

    # logits^T = -(||w||^2[:, None] - 2 * W @ x^T).
    # The reference's per-pixel sum(2*x) term is constant along the softmax
    # (codebook) axis and cancels exactly inside the softmax, so it is dropped.
    wx = lax.dot_general(w, xT, (((1,), (0,)), ((), ())),
                         preferred_element_type=jnp.float32)       # (N, tm)
    logits = 2.0 * wx - wsq_ref[...]                               # (N, tm)

    # gumbel_softmax(logits, tau, hard=False): softmax over the N (sublane) axis
    z = (logits + g) * inv_tau
    z = z - jnp.max(z, axis=0, keepdims=True)
    e = jnp.exp(z)
    s = jnp.sum(e, axis=0, keepdims=True)                          # (1, tm)
    p = e * (1.0 / s)                                              # (N, tm)

    probsT_ref[...] = p.astype(probsT_ref.dtype)
    # soft_q^T = W^T @ probs^T  -> (D, tm)
    softqT_ref[...] = lax.dot_general(w, p, (((0,), (0,)), ((), ())),
                                      preferred_element_type=jnp.float32
                                      ).astype(softqT_ref.dtype)

    # Per-tile partial sum of probabilities over pixels (for avg_probs /
    # perplexity); mask out zero-padded tail columns so exactly M rows count.
    if m_padded != m_total:
        col = i * tm + lax.broadcasted_iota(jnp.int32, p.shape, 1)
        p = jnp.where(col < m_total, p, 0.0)
    partial_ref[...] = jnp.sum(p, axis=1, keepdims=True)[None]     # (1, N, 1)


def soft_quantizer_forward(x, embedding_weight, key, *, tau):
    """x: (B, C, H, W) with C == embedding_dim.  embedding_weight: (N, D).
    key: jax PRNG key for the Gumbel noise.
    Returns (0.0, soft_q (B,C,H,W), perplexity (), probabilities (B*H*W, N))."""
    B, C, H, W = x.shape
    N, D = embedding_weight.shape
    assert C == D, "channel dim must equal embedding_dim"
    M = B * H * W

    # NCHW -> (D, M) (transposed flat_input); column m = b*H*W + h*W + w, the
    # same ordering as the reference's permute(0,2,3,1).view(-1, D).
    x_t = jnp.transpose(x, (1, 0, 2, 3)).reshape(D, M).astype(jnp.float32)

    w = embedding_weight.astype(jnp.float32)
    w_sq = jnp.sum(w * w, axis=1, keepdims=True)        # (N, 1), hoisted once

    # 128-aligned cdiv tiling of the pixel axis with a masked tail tile.
    grid_n = int(pl.cdiv(M, _TM_MAX))
    tm = _round_up(int(pl.cdiv(M, grid_n)), _LANE)
    m_pad = tm * grid_n
    if m_pad != M:
        x_t = jnp.pad(x_t, ((0, 0), (0, m_pad - M)))

    # Gumbel(0,1) noise, generated on-device by XLA, consumed lane-dense at
    # exactly (N, m_pad).
    # TODO(synk): on bare-metal TPU this could use in-kernel pltpu.prng_seed /
    # prng_random_bits (saves the HBM read), but the stateful TPU PRNG has no
    # interpret/CPU lowering, so the noise is passed in as a regular input.
    gumbel = jax.random.gumbel(key, (N, m_pad), dtype=jnp.float32)

    kernel = functools.partial(_soft_quantizer_kernel,
                               inv_tau=1.0 / tau, tm=tm,
                               m_total=M, m_padded=m_pad)

    probs_t, softq_t, partials = pl.pallas_call(
        kernel,
        out_shape=(
            jax.ShapeDtypeStruct((N, m_pad), jnp.float32),      # probabilities^T
            jax.ShapeDtypeStruct((D, m_pad), jnp.float32),      # soft_q^T
            jax.ShapeDtypeStruct((grid_n, N, 1), jnp.float32),  # partial prob sums
        ),
        grid=(grid_n,),
        in_specs=[
            pl.BlockSpec((D, tm), lambda i: (0, i)),   # x^T tile
            pl.BlockSpec((N, D), lambda i: (0, 0)),    # codebook (resident)
            pl.BlockSpec((N, 1), lambda i: (0, 0)),    # ||w||^2 (resident)
            pl.BlockSpec((N, tm), lambda i: (0, i)),   # Gumbel noise tile
        ],
        out_specs=(
            pl.BlockSpec((N, tm), lambda i: (0, i)),
            pl.BlockSpec((D, tm), lambda i: (0, i)),
            pl.BlockSpec((1, N, 1), lambda i: (i, 0, 0)),
        ),
        compiler_params=pltpu.CompilerParams(
            dimension_semantics=("parallel",)),        # no cross-step state
    )(x_t, w, w_sq, gumbel)

    probabilities = jnp.transpose(probs_t[:, :M])                       # (M, N)
    soft_q = jnp.transpose(softq_t[:, :M].reshape(D, B, H, W),
                           (1, 0, 2, 3))                                # (B, D, H, W)

    avg_probs = jnp.sum(partials, axis=(0, 2)) / M                      # (N,)
    perplexity = jnp.exp(-jnp.sum(avg_probs * jnp.log(avg_probs + 1e-10)))

    return jnp.float32(0.0), soft_q, perplexity, probabilities


if __name__ == "__main__":
    # SoftQuantizer(num_embeddings=32, embedding_dim=4, tau=1.0, std=1.0)
    B, C, H, W = 2, 4, 16, 16
    num_embeddings, embedding_dim = 32, 4
    tau, std = 1.0, 1.0

    key = jax.random.PRNGKey(0)
    kx, kw, kg = jax.random.split(key, 3)
    x = jax.random.normal(kx, (B, C, H, W), dtype=jnp.float32)
    emb_w = std * jax.random.normal(kw, (num_embeddings, embedding_dim),
                                    dtype=jnp.float32)

    fwd = jax.jit(functools.partial(soft_quantizer_forward, tau=tau))
    loss, soft_q, perplexity, probabilities = fwd(x, emb_w, kg)
    jax.block_until_ready((loss, soft_q, perplexity, probabilities))

    assert soft_q.shape == (B, C, H, W)
    assert probabilities.shape == (B * H * W, num_embeddings)
    assert perplexity.shape == ()
    assert bool(jnp.all(jnp.isfinite(soft_q)))
    assert bool(jnp.all(jnp.isfinite(probabilities)))
    row_sums = jnp.sum(probabilities, axis=-1)
    assert bool(jnp.all(jnp.abs(row_sums - 1.0) < 1e-3))
    assert bool(jnp.isfinite(perplexity)) and float(perplexity) > 0.0
    print("KERNEL_OK")
</pallas_src>

<mosaic_0001>
module attributes {stable_mosaic.version = 11 : i64} {
  func.func @_soft_quantizer_kernel(%arg0: i32, %arg1: memref<4x512xf32, #tpu.memory_space<vmem>>, %arg2: memref<32x4xf32, #tpu.memory_space<vmem>>, %arg3: memref<32x1xf32, #tpu.memory_space<vmem>>, %arg4: memref<32x512xf32, #tpu.memory_space<vmem>>, %arg5: memref<32x512xf32, #tpu.memory_space<vmem>>, %arg6: memref<4x512xf32, #tpu.memory_space<vmem>>, %arg7: memref<1x32x1xf32, #tpu.memory_space<vmem>>) attributes {dimension_semantics = [#tpu.dimension_semantics<parallel>], iteration_bounds = array<i64: 1>, scalar_prefetch = 0 : i64, scratch_operands = 0 : i64, tpu.core_type = #tpu.core_type<tc>, window_params = [{transform_indices = @transform_0, window_bounds = array<i64: 4, 512>}, {pipeline_mode = #tpu.pipeline_mode<synchronous>, transform_indices = @transform_1, window_bounds = array<i64: 32, 4>}, {pipeline_mode = #tpu.pipeline_mode<synchronous>, transform_indices = @transform_2, window_bounds = array<i64: 32, 1>}, {transform_indices = @transform_3, window_bounds = array<i64: 32, 512>}, {transform_indices = @transform_4, window_bounds = array<i64: 32, 512>}, {transform_indices = @transform_5, window_bounds = array<i64: 4, 512>}, {transform_indices = @transform_6, window_bounds = array<i64: 1, 32, 1>}]} {
    %c0 = arith.constant 0 : index
    %c0_0 = arith.constant 0 : index
    %0 = vector.load %arg1[%c0, %c0_0] : memref<4x512xf32, #tpu.memory_space<vmem>>, vector<4x512xf32>
    %c0_1 = arith.constant 0 : index
    %c0_2 = arith.constant 0 : index
    %1 = vector.load %arg2[%c0_1, %c0_2] : memref<32x4xf32, #tpu.memory_space<vmem>>, vector<32x4xf32>
    %c0_3 = arith.constant 0 : index
    %c0_4 = arith.constant 0 : index
    %2 = vector.load %arg4[%c0_3, %c0_4] : memref<32x512xf32, #tpu.memory_space<vmem>>, vector<32x512xf32>
    %cst = arith.constant dense<0.000000e+00> : vector<32x512xf32>
    %3 = tpu.matmul %1, %0, %cst {dimension_numbers = #tpu.dot_dimension_numbers<[1], [0], [0], [1], [0, 0, 1, 1], [], []>} : vector<32x4xf32>, vector<4x512xf32>, vector<32x512xf32> -> vector<32x512xf32>
    %cst_5 = arith.constant 2.000000e+00 : f32
    %4 = vector.broadcast %cst_5 : f32 to vector<32x512xf32>
    %5 = arith.mulf %4, %3 : vector<32x512xf32>
    %c0_6 = arith.constant 0 : index
    %c0_7 = arith.constant 0 : index
    %6 = vector.load %arg3[%c0_6, %c0_7] : memref<32x1xf32, #tpu.memory_space<vmem>>, vector<32x1xf32>
    %7 = vector.broadcast %6 : vector<32x1xf32> to vector<32x512xf32>
    %8 = arith.subf %5, %7 : vector<32x512xf32>
    %9 = arith.addf %8, %2 : vector<32x512xf32>
    %cst_8 = arith.constant 1.000000e+00 : f32
    %10 = vector.broadcast %cst_8 : f32 to vector<32x512xf32>
    %11 = arith.mulf %9, %10 : vector<32x512xf32>
    %cst_9 = arith.constant dense<0xFF800000> : vector<512xf32>
    %12 = vector.multi_reduction <maximumf>, %11, %cst_9 [0] : vector<32x512xf32> to vector<512xf32>
    %13 = vector.shape_cast %12 : vector<512xf32> to vector<1x512xf32>
    %14 = vector.broadcast %13 : vector<1x512xf32> to vector<32x512xf32>
    %15 = arith.subf %11, %14 : vector<32x512xf32>
    %16 = math.exp %15 : vector<32x512xf32>
    %cst_10 = arith.constant dense<0.000000e+00> : vector<512xf32>
    %17 = vector.multi_reduction <add>, %16, %cst_10 [0] : vector<32x512xf32> to vector<512xf32>
    %18 = vector.shape_cast %17 : vector<512xf32> to vector<1x512xf32>
    %cst_11 = arith.constant 1.000000e+00 : f32
    %19 = vector.broadcast %cst_11 : f32 to vector<1x512xf32>
    %20 = arith.divf %19, %18 : vector<1x512xf32>
    %21 = vector.broadcast %20 : vector<1x512xf32> to vector<32x512xf32>
    %22 = arith.mulf %16, %21 : vector<32x512xf32>
    %c0_12 = arith.constant 0 : index
    %c0_13 = arith.constant 0 : index
    %23 = vector.load %arg5[%c0_12, %c0_13] : memref<32x512xf32, #tpu.memory_space<vmem>>, vector<32x512xf32>
    tpu.vector_store %arg5[%c0_12, %c0_13], %22 {strides = array<i32>} : memref<32x512xf32, #tpu.memory_space<vmem>>, vector<32x512xf32>,
    %cst_14 = arith.constant dense<0.000000e+00> : vector<4x512xf32>
    %24 = tpu.matmul %1, %22, %cst_14 {dimension_numbers = #tpu.dot_dimension_numbers<[0], [0], [1], [1], [0, 1, 1, 1], [], []>} : vector<32x4xf32>, vector<32x512xf32>, vector<4x512xf32> -> vector<4x512xf32>
    %c0_15 = arith.constant 0 : index
    %c0_16 = arith.constant 0 : index
    %25 = vector.load %arg6[%c0_15, %c0_16] : memref<4x512xf32, #tpu.memory_space<vmem>>, vector<4x512xf32>
    tpu.vector_store %arg6[%c0_15, %c0_16], %24 {strides = array<i32>} : memref<4x512xf32, #tpu.memory_space<vmem>>, vector<4x512xf32>,
    %cst_17 = arith.constant dense<0.000000e+00> : vector<32xf32>
    %26 = vector.multi_reduction <add>, %22, %cst_17 [1] : vector<32x512xf32> to vector<32xf32>
    %27 = vector.shape_cast %26 : vector<32xf32> to vector<32x1xf32>
    %28 = vector.shape_cast %27 : vector<32x1xf32> to vector<1x32x1xf32>
    %c0_18 = arith.constant 0 : index
    %c0_19 = arith.constant 0 : index
    %c0_20 = arith.constant 0 : index
    %29 = vector.load %arg7[%c0_18, %c0_19, %c0_20] : memref<1x32x1xf32, #tpu.memory_space<vmem>>, vector<1x32x1xf32>
    tpu.vector_store %arg7[%c0_18, %c0_19, %c0_20], %28 {strides = array<i32>} : memref<1x32x1xf32, #tpu.memory_space<vmem>>, vector<1x32x1xf32>,
    return
  }
  func.func @transform_0(%arg0: i32) -> (i32, i32) {
    %c0_i32 = arith.constant 0 : i32
    %c0_i32_0 = arith.constant 0 : i32
    return %c0_i32, %arg0 : i32, i32
  }
  func.func @transform_1(%arg0: i32) -> (i32, i32) {
    %c0_i32 = arith.constant 0 : i32
    %c0_i32_0 = arith.constant 0 : i32
    %c0_i32_1 = arith.constant 0 : i32
    return %c0_i32, %c0_i32_0 : i32, i32
  }
  func.func @transform_2(%arg0: i32) -> (i32, i32) {
    %c0_i32 = arith.constant 0 : i32
    %c0_i32_0 = arith.constant 0 : i32
    %c0_i32_1 = arith.constant 0 : i32
    return %c0_i32, %c0_i32_0 : i32, i32
  }
  func.func @transform_3(%arg0: i32) -> (i32, i32) {
    %c0_i32 = arith.constant 0 : i32
    %c0_i32_0 = arith.constant 0 : i32
    return %c0_i32, %arg0 : i32, i32
  }
  func.func @transform_4(%arg0: i32) -> (i32, i32) {
    %c0_i32 = arith.constant 0 : i32
    %c0_i32_0 = arith.constant 0 : i32
    return %c0_i32, %arg0 : i32, i32
  }
  func.func @transform_5(%arg0: i32) -> (i32, i32) {
    %c0_i32 = arith.constant 0 : i32
    %c0_i32_0 = arith.constant 0 : i32
    return %c0_i32, %arg0 : i32, i32
  }
  func.func @transform_6(%arg0: i32) -> (i32, i32, i32) {
    %c0_i32 = arith.constant 0 : i32
    %c0_i32_0 = arith.constant 0 : i32
    %c0_i32_1 = arith.constant 0 : i32
    return %arg0, %c0_i32, %c0_i32_0 : i32, i32, i32
  }
}

</mosaic_0001>

<llo_original>
// kernel: soft_quantizer_forward.1
$region0: #{soft_quantizer_forward.1}
  #allocation0 [shape = 'u32[]', space=smem, size = 0x4, offset = 0x4, fixed_abs, tag = 'smem constant byte address 0x4 - core index']
  #allocation1 [shape = 'u32[144,128]{1,0:T(1,128)}', space=vmem, size = 0x12000, scoped, tag = 'internal scratch']
  %s0 = inlined_call_operand.vmem [shape: f32[4,512], index: 0, kind: input, shape index: {}]
  %s1 = inlined_call_operand.vmem [shape: f32[32,4], index: 1, kind: input, shape index: {}]
  %s2 = inlined_call_operand.vmem [shape: f32[32,1], index: 2, kind: input, shape index: {}]
  %s3 = inlined_call_operand.vmem [shape: f32[32,512], index: 3, kind: input, shape index: {}]
  %s4 = inlined_call_operand.hbm [shape: f32[32,512], index: 4, kind: output, shape index: {0}]
  %s5 = inlined_call_operand.vmem [shape: f32[4,512], index: 5, kind: output, shape index: {1}]
  %s6 = inlined_call_operand.vmem [shape: f32[1,32,1], index: 6, kind: output, shape index: {2}]
  %7 = xla_tuple %s4, %s5, %s6
  %s8 = sld [smem:[#allocation0]]
  $region42: #{soft_quantizer_forward.1} parent=0
    _
  %s10 = ssub.s32 1, %s8
  %s11 = scalar_select 0, %s10, %s8
  $region1: #{soft_quantizer_forward.1} parent=0
    #allocation2 [shape = 'u8[65536]{0}', space=vmem, size = 0x10000, scoped, tag = 'output window, operand 0, single buffered']
    #allocation3 [shape = 's32[1]{0}', space=sflag, size = 0x4, scoped, tag = 'scoped memory for soft_quantizer_forward.1']
    %12 = vsyncpa [#allocation3], 0
    // Predicated region
    $region2: #{soft_quantizer_forward.1} parent=1 // pred_check
      _
    $region3: #{soft_quantizer_forward.1} parent=1 // pred_check_branch
      %14 = sbr.rel (0) target = $region5
    $region4: #{soft_quantizer_forward.1} parent=1 // pred_region
      _
    $region5: #{soft_quantizer_forward.1} parent=1 // pred_fallthru
      _
    // Predicated region
    $region6: #{soft_quantizer_forward.1} parent=1 // pred_check
      _
    $region7: #{soft_quantizer_forward.1} parent=1 // pred_check_branch
      %16 = sbr.rel (0) target = $region9
    $region8: #{soft_quantizer_forward.1} parent=1 // pred_region
      _
    $region9: #{soft_quantizer_forward.1} parent=1 // pred_fallthru
      _
    // Predicated region
    $region10: #{soft_quantizer_forward.1} parent=1 // pred_check
      _
    $region11: #{soft_quantizer_forward.1} parent=1 // pred_check_branch
      %18 = sbr.rel (0) target = $region13
    $region12: #{soft_quantizer_forward.1} parent=1 // pred_region
      _
    $region13: #{soft_quantizer_forward.1} parent=1 // pred_fallthru
      _
    // Predicated region
    $region14: #{soft_quantizer_forward.1} parent=1 // pred_check
      _
    $region15: #{soft_quantizer_forward.1} parent=1 // pred_check_branch
      %20 = sbr.rel (0) target = $region17
    $region16: #{soft_quantizer_forward.1} parent=1 // pred_region
      _
    $region17: #{soft_quantizer_forward.1} parent=1 // pred_fallthru
      _
    %v21 = vld [vmem:[%s0] sm:$0xff]
    %v22 = vld [vmem:[%s0 + $0x8] sm:$0xff]
    %v23 = vld [vmem:[%s1] sm:$0xff]
    %v24 = vld [vmem:[%s1 + $0x8] sm:$0xff]
    %v25 = vld [vmem:[%s1 + $0x10] sm:$0xff]
    %v26 = vld [vmem:[%s1 + $0x18] sm:$0xff]
    %v27 = vld [vmem:[%s3] sm:$0xff]
    %v28 = vld [vmem:[%s3 + $0x8] sm:$0xff]
    %v29 = vld [vmem:[%s3 + $0x10] sm:$0xff]
    %v30 = vld [vmem:[%s3 + $0x18] sm:$0xff]
    %v31 = vld [vmem:[%s3 + $0x20] sm:$0xff]
    %v32 = vld [vmem:[%s3 + $0x28] sm:$0xff]
    %v33 = vld [vmem:[%s3 + $0x30] sm:$0xff]
    %v34 = vld [vmem:[%s3 + $0x38] sm:$0xff]
    %v35 = vld [vmem:[%s3 + $0x40] sm:$0xff]
    %v36 = vld [vmem:[%s3 + $0x48] sm:$0xff]
    %v37 = vld [vmem:[%s3 + $0x50] sm:$0xff]
    %v38 = vld [vmem:[%s3 + $0x58] sm:$0xff]
    %v39 = vld [vmem:[%s3 + $0x60] sm:$0xff]
    %v40 = vld [vmem:[%s3 + $0x68] sm:$0xff]
    %v41 = vld [vmem:[%s3 + $0x70] sm:$0xff]
    %v42 = vld [vmem:[%s3 + $0x78] sm:$0xff]
    %v45 = vcombine.high %v21, %v21
    %v46 = vcombine.high %v22, %v22
    %vm47 = vcmask 31744
    %v49 = vsel %vm47, %v23, 0
    %v52 = vsel %vm47, %v24, 0
    %v55 = vsel %vm47, %v25, 0
    %v58 = vsel %vm47, %v26, 0
    %vm60 = vcmask 1043456
    %v61 = vsel %vm60, %v21, 0
    %v63 = vsel %vm60, %v45, 0
    %v65 = vsel %vm60, %v22, 0
    %v67 = vsel %vm60, %v46, 0
    %69 = vmatprep.subr.mxu0 0.0
    %70 = vmatpush1.msra.mxu0 0.0
    %71 = vmatprep.subr.mxu0 0.0
    %72 = vmatpush1.msra.mxu0 0.0
    %73 = vmatprep.subr.mxu0 0.0
    %74 = vmatpush1.msra.mxu0 0.0
    %75 = vmatprep.subr.mxu0 0.0
    %76 = vmatpush1.msra.mxu0 0.0
    %77 = vmatprep.subr.mxu0 0.0
    %78 = vmatpush1.msra.mxu0 0.0
    %79 = vmatprep.subr.mxu0 0.0
    %80 = vmatpush1.msra.mxu0 0.0
    %81 = vmatprep.subr.mxu0 0.0
    %82 = vmatpush1.msra.mxu0 0.0
    %83 = vmatprep.subr.mxu0 0.0
    %84 = vmatpush1.msra.mxu0 0.0
    %85 = vmatprep.subr.mxu0 0.0
    %86 = vmatpush1.msra.mxu0 0.0
    %87 = vmatprep.subr.mxu0 0.0
    %88 = vmatpush1.msra.mxu0 0.0
    %89 = vmatprep.subr.mxu0 0.0
    %90 = vmatpush1.msra.mxu0 0.0
    %91 = vmatprep.subr.mxu0 0.0
    %92 = vmatpush1.msra.mxu0 0.0
    %93 = vmatprep.subr.mxu0 0.0
    %94 = vmatpush1.msra.mxu0 0.0
    %95 = vmatprep.subr.mxu0 0.0
    %96 = vmatpush1.msra.mxu0 0.0
    %97 = vmatprep.subr.mxu0 0.0
    %98 = vmatpush1.msra.mxu0 0.0
    %99 = vmatprep.subr.mxu0 %v63
    %100 = vmatpush1.msra.mxu0 %v61
    %101 = vmatprep.subr.mxu0 0.0
    %102 = vmatpush2.msra.mxu0 0.0
    %103 = vmatprep.subr.mxu0 0.0
    %104 = vmatpush2.msra.mxu0 0.0
    %105 = vmatprep.subr.mxu0 0.0
    %106 = vmatpush2.msra.mxu0 0.0
    %107 = vmatprep.subr.mxu0 0.0
    %108 = vmatpush2.msra.mxu0 0.0
    %109 = vmatprep.subr.mxu0 0.0
    %110 = vmatpush2.msra.mxu0 0.0
    %111 = vmatprep.subr.mxu0 0.0
    %112 = vmatpush2.msra.mxu0 0.0
    %113 = vmatprep.subr.mxu0 0.0
    %114 = vmatpush2.msra.mxu0 0.0
    %115 = vmatprep.subr.mxu0 0.0
    %116 = vmatpush2.msra.mxu0 0.0
    %117 = vmatprep.subr.mxu0 0.0
    %118 = vmatpush2.msra.mxu0 0.0
    %119 = vmatprep.subr.mxu0 0.0
    %120 = vmatpush2.msra.mxu0 0.0
    %121 = vmatprep.subr.mxu0 0.0
    %122 = vmatpush2.msra.mxu0 0.0
    %123 = vmatprep.subr.mxu0 0.0
    %124 = vmatpush2.msra.mxu0 0.0
    %125 = vmatprep.subr.mxu0 0.0
    %126 = vmatpush2.msra.mxu0 0.0
    %127 = vmatprep.subr.mxu0 0.0
    %128 = vmatpush2.msra.mxu0 0.0
    %129 = vmatprep.subr.mxu0 0.0
    %130 = vmatpush2.msra.mxu0 0.0
    %131 = vmatprep.subr.mxu0 0.0
    %132 = vmatpush2.msra.mxu0 0.0
    %133 = vmatprep.mubr.f32.mxu0 0.0
    %134 = vmatmul.mubr.f32.gmra.mxu0 %v49
    %v135 = vpop.f32.mrf.mxu0
    %v136 = vadd.f32 0.0, %v135
    %v137 = vpop.f32.mrf.mxu0
    %v138 = vadd.f32 0.0, %v137
    %139 = vmatprep.mubr.f32.mxu0 0.0
    %140 = vmatmul.mubr.f32.gmra.mxu0 %v52
    %v141 = vpop.f32.mrf.mxu0
    %v142 = vadd.f32 0.0, %v141
    %v143 = vpop.f32.mrf.mxu0
    %v144 = vadd.f32 0.0, %v143
    %145 = vmatprep.mubr.f32.mxu0 0.0
    %146 = vmatmul.mubr.f32.gmra.mxu0 %v55
    %v147 = vpop.f32.mrf.mxu0
    %v148 = vadd.f32 0.0, %v147
    %v149 = vpop.f32.mrf.mxu0
    %v150 = vadd.f32 0.0, %v149
    %151 = vmatprep.mubr.f32.mxu0 0.0
    %152 = vmatmul.mubr.f32.gmra.mxu0 %v58
    %v153 = vpop.f32.mrf.mxu0
    %v154 = vadd.f32 0.0, %v153
    %v155 = vpop.f32.mrf.mxu0
    %v156 = vadd.f32 0.0, %v155
    %157 = vdwg.mxu0
    %158 = vmatprep.subr.mxu0 0.0
    %159 = vmatpush1.msra.mxu0 0.0
    %160 = vmatprep.subr.mxu0 0.0
    %161 = vmatpush1.msra.mxu0 0.0
    %162 = vmatprep.subr.mxu0 0.0
    %163 = vmatpush1.msra.mxu0 0.0
    %164 = vmatprep.subr.mxu0 0.0
    %165 = vmatpush1.msra.mxu0 0.0
    %166 = vmatprep.subr.mxu0 0.0
    %167 = vmatpush1.msra.mxu0 0.0
    %168 = vmatprep.subr.mxu0 0.0
    %169 = vmatpush1.msra.mxu0 0.0
    %170 = vmatprep.subr.mxu0 0.0
    %171 = vmatpush1.msra.mxu0 0.0
    %172 = vmatprep.subr.mxu0 0.0
    %173 = vmatpush1.msra.mxu0 0.0
    %174 = vmatprep.subr.mxu0 0.0
    %175 = vmatpush1.msra.mxu0 0.0
    %176 = vmatprep.subr.mxu0 0.0
    %177 = vmatpush1.msra.mxu0 0.0
    %178 = vmatprep.subr.mxu0 0.0
    %179 = vmatpush1.msra.mxu0 0.0
    %180 = vmatprep.subr.mxu0 0.0
    %181 = vmatpush1.msra.mxu0 0.0
    %182 = vmatprep.subr.mxu0 0.0
    %183 = vmatpush1.msra.mxu0 0.0
    %184 = vmatprep.subr.mxu0 0.0
    %185 = vmatpush1.msra.mxu0 0.0
    %186 = vmatprep.subr.mxu0 0.0
    %187 = vmatpush1.msra.mxu0 0.0
    %188 = vmatprep.subr.mxu0 %v67
    %189 = vmatpush1.msra.mxu0 %v65
    %190 = vmatprep.subr.mxu0 0.0
    %191 = vmatpush2.msra.mxu0 0.0
    %192 = vmatprep.subr.mxu0 0.0
    %193 = vmatpush2.msra.mxu0 0.0
    %194 = vmatprep.subr.mxu0 0.0
    %195 = vmatpush2.msra.mxu0 0.0
    %196 = vmatprep.subr.mxu0 0.0
    %197 = vmatpush2.msra.mxu0 0.0
    %198 = vmatprep.subr.mxu0 0.0
    %199 = vmatpush2.msra.mxu0 0.0
    %200 = vmatprep.subr.mxu0 0.0
    %201 = vmatpush2.msra.mxu0 0.0
    %202 = vmatprep.subr.mxu0 0.0
    %203 = vmatpush2.msra.mxu0 0.0
    %204 = vmatprep.subr.mxu0 0.0
    %205 = vmatpush2.msra.mxu0 0.0
    %206 = vmatprep.subr.mxu0 0.0
    %207 = vmatpush2.msra.mxu0 0.0
    %208 = vmatprep.subr.mxu0 0.0
    %209 = vmatpush2.msra.mxu0 0.0
    %210 = vmatprep.subr.mxu0 0.0
    %211 = vmatpush2.msra.mxu0 0.0
    %212 = vmatprep.subr.mxu0 0.0
    %213 = vmatpush2.msra.mxu0 0.0
    %214 = vmatprep.subr.mxu0 0.0
    %215 = vmatpush2.msra.mxu0 0.0
    %216 = vmatprep.subr.mxu0 0.0
    %217 = vmatpush2.msra.mxu0 0.0
    %218 = vmatprep.subr.mxu0 0.0
    %219 = vmatpush2.msra.mxu0 0.0
    %220 = vmatprep.subr.mxu0 0.0
    %221 = vmatpush2.msra.mxu0 0.0
    %222 = vmatprep.mubr.f32.mxu0 0.0
    %223 = vmatmul.mubr.f32.gmra.mxu0 %v49
    %v224 = vpop.f32.mrf.mxu0
    %v225 = vadd.f32 0.0, %v224
    %v226 = vpop.f32.mrf.mxu0
    %v227 = vadd.f32 0.0, %v226
    %228 = vmatprep.mubr.f32.mxu0 0.0
    %229 = vmatmul.mubr.f32.gmra.mxu0 %v52
    %v230 = vpop.f32.mrf.mxu0
    %v231 = vadd.f32 0.0, %v230
    %v232 = vpop.f32.mrf.mxu0
    %v233 = vadd.f32 0.0, %v232
    %234 = vmatprep.mubr.f32.mxu0 0.0
    %235 = vmatmul.mubr.f32.gmra.mxu0 %v55
    %v236 = vpop.f32.mrf.mxu0
    %v237 = vadd.f32 0.0, %v236
    %v238 = vpop.f32.mrf.mxu0
    %v239 = vadd.f32 0.0, %v238
    %240 = vmatprep.mubr.f32.mxu0 0.0
    %241 = vmatmul.mubr.f32.gmra.mxu0 %v58
    %v242 = vpop.f32.mrf.mxu0
    %v243 = vadd.f32 0.0, %v242
    %v244 = vpop.f32.mrf.mxu0
    %v245 = vadd.f32 0.0, %v244
    %246 = vdwg.mxu0
    %v247 = vmul.f32 %v136, 2.0
    %v248 = vmul.f32 %v138, 2.0
    %v249 = vmul.f32 %v225, 2.0
    %v250 = vmul.f32 %v227, 2.0
    %v251 = vmul.f32 %v142, 2.0
    %v252 = vmul.f32 %v144, 2.0
    %v253 = vmul.f32 %v231, 2.0
    %v254 = vmul.f32 %v233, 2.0
    %v255 = vmul.f32 %v148, 2.0
    %v256 = vmul.f32 %v150, 2.0
    %v257 = vmul.f32 %v237, 2.0
    %v258 = vmul.f32 %v239, 2.0
    %v259 = vmul.f32 %v154, 2.0
    %v260 = vmul.f32 %v156, 2.0
    %v261 = vmul.f32 %v243, 2.0
    %v262 = vmul.f32 %v245, 2.0
    %v263 = vld [vmem:[%s2] sm:$0xff]
    %v264 = vld [vmem:[%s2 + $0x8] sm:$0xff]
    %v265 = vld [vmem:[%s2 + $0x10] sm:$0xff]
    %v266 = vld [vmem:[%s2 + $0x18] sm:$0xff]
    %268 = vset.pattern.permute.xlu0 0
    %269 = vperm.xlu0 %268, %v263
    %v270 = vpop.permute.xlu0 %269
    %273 = vset.pattern.permute.xlu0 0
    %274 = vperm.xlu0 %273, %v264
    %v275 = vpop.permute.xlu0 %274
    %278 = vset.pattern.permute.xlu0 0
    %279 = vperm.xlu0 %278, %v265
    %v280 = vpop.permute.xlu0 %279
    %283 = vset.pattern.permute.xlu0 0
    %284 = vperm.xlu0 %283, %v266
    %v285 = vpop.permute.xlu0 %284
    %v287 = vsub.f32 %v247, %v270
    %v288 = vsub.f32 %v248, %v270
    %v289 = vsub.f32 %v249, %v270
    %v290 = vsub.f32 %v250, %v270
    %v291 = vsub.f32 %v251, %v275
    %v292 = vsub.f32 %v252, %v275
    %v293 = vsub.f32 %v253, %v275
    %v294 = vsub.f32 %v254, %v275
    %v295 = vsub.f32 %v255, %v280
    %v296 = vsub.f32 %v256, %v280
    %v297 = vsub.f32 %v257, %v280
    %v298 = vsub.f32 %v258, %v280
    %v299 = vsub.f32 %v259, %v285
    %v300 = vsub.f32 %v260, %v285
    %v301 = vsub.f32 %v261, %v285
    %v302 = vsub.f32 %v262, %v285
    %v303 = vadd.f32 %v287, %v27
    %v304 = vadd.f32 %v288, %v28
    %v305 = vadd.f32 %v289, %v29
    %v306 = vadd.f32 %v290, %v30
    %v307 = vadd.f32 %v291, %v31
    %v308 = vadd.f32 %v292, %v32
    %v309 = vadd.f32 %v293, %v33
    %v310 = vadd.f32 %v294, %v34
    %v311 = vadd.f32 %v295, %v35
    %v312 = vadd.f32 %v296, %v36
    %v313 = vadd.f32 %v297, %v37
    %v314 = vadd.f32 %v298, %v38
    %v315 = vadd.f32 %v299, %v39
    %v316 = vadd.f32 %v300, %v40
    %v317 = vadd.f32 %v301, %v41
    %v318 = vadd.f32 %v302, %v42
    %v319 = vmax.f32 %v303, %v307
    %v320 = vmax.f32 %v319, %v311
    %v321 = vmax.f32 %v320, %v315
    %v322 = vrot.slane %v321, 4
    %v323 = vmax.f32 %v321, %v322
    %v324 = vrot.slane %v323, 2
    %v325 = vmax.f32 %v323, %v324
    %v326 = vrot.slane %v325, 1
    %v327 = vmax.f32 %v325, %v326
    %v328 = vmax.f32 %v304, %v308
    %v329 = vmax.f32 %v328, %v312
    %v330 = vmax.f32 %v329, %v316
    %v331 = vrot.slane %v330, 4
    %v332 = vmax.f32 %v330, %v331
    %v333 = vrot.slane %v332, 2
    %v334 = vmax.f32 %v332, %v333
    %v335 = vrot.slane %v334, 1
    %v336 = vmax.f32 %v334, %v335
    %v337 = vmax.f32 %v305, %v309
    %v338 = vmax.f32 %v337, %v313
    %v339 = vmax.f32 %v338, %v317
    %v340 = vrot.slane %v339, 4
    %v341 = vmax.f32 %v339, %v340
    %v342 = vrot.slane %v341, 2
    %v343 = vmax.f32 %v341, %v342
    %v344 = vrot.slane %v343, 1
    %v345 = vmax.f32 %v343, %v344
    %v346 = vmax.f32 %v306, %v310
    %v347 = vmax.f32 %v346, %v314
    %v348 = vmax.f32 %v347, %v318
    %v349 = vrot.slane %v348, 4
    %v350 = vmax.f32 %v348, %v349
    %v351 = vrot.slane %v350, 2
    %v352 = vmax.f32 %v350, %v351
    %v353 = vrot.slane %v352, 1
    %v354 = vmax.f32 %v352, %v353
    %v355 = vsub.f32 %v303, %v327
    %v356 = vsub.f32 %v304, %v336
    %v357 = vsub.f32 %v305, %v345
    %v358 = vsub.f32 %v306, %v354
    %v359 = vsub.f32 %v307, %v327
    %v360 = vsub.f32 %v308, %v336
    %v361 = vsub.f32 %v309, %v345
    %v362 = vsub.f32 %v310, %v354
    %v363 = vsub.f32 %v311, %v327
    %v364 = vsub.f32 %v312, %v336
    %v365 = vsub.f32 %v313, %v345
    %v366 = vsub.f32 %v314, %v354
    %v367 = vsub.f32 %v315, %v327
    %v368 = vsub.f32 %v316, %v336
    %v369 = vsub.f32 %v317, %v345
    %v370 = vsub.f32 %v318, %v354
    %v371 = vmul.f32 %v355, 1.442695
    %v372 = vpow.pop %v371
    %v373 = vmul.f32 %v356, 1.442695
    %v374 = vpow.pop %v373
    %v375 = vmul.f32 %v357, 1.442695
    %v376 = vpow.pop %v375
    %v377 = vmul.f32 %v358, 1.442695
    %v378 = vpow.pop %v377
    %v379 = vmul.f32 %v359, 1.442695
    %v380 = vpow.pop %v379
    %v381 = vmul.f32 %v360, 1.442695
    %v382 = vpow.pop %v381
    %v383 = vmul.f32 %v361, 1.442695
    %v384 = vpow.pop %v383
    %v385 = vmul.f32 %v362, 1.442695
    %v386 = vpow.pop %v385
    %v387 = vmul.f32 %v363, 1.442695
    %v388 = vpow.pop %v387
    %v389 = vmul.f32 %v364, 1.442695
    %v390 = vpow.pop %v389
    %v391 = vmul.f32 %v365, 1.442695
    %v392 = vpow.pop %v391
    %v393 = vmul.f32 %v366, 1.442695
    %v394 = vpow.pop %v393
    %v395 = vmul.f32 %v367, 1.442695
    %v396 = vpow.pop %v395
    %v397 = vmul.f32 %v368, 1.442695
    %v398 = vpow.pop %v397
    %v399 = vmul.f32 %v369, 1.442695
    %v400 = vpow.pop %v399
    %v401 = vmul.f32 %v370, 1.442695
    %v402 = vpow.pop %v401
    %v403 = vadd.f32 %v372, %v380
    %v404 = vadd.f32 %v403, %v388
    %v405 = vadd.f32 %v404, %v396
    %v406 = vrot.slane %v405, 4
    %v407 = vadd.f32 %v405, %v406
    %v408 = vrot.slane %v407, 2
    %v409 = vadd.f32 %v407, %v408
    %v410 = vrot.slane %v409, 1
    %v411 = vadd.f32 %v409, %v410
    %v412 = vadd.f32 %v374, %v382
    %v413 = vadd.f32 %v412, %v390
    %v414 = vadd.f32 %v413, %v398
    %v415 = vrot.slane %v414, 4
    %v416 = vadd.f32 %v414, %v415
    %v417 = vrot.slane %v416, 2
    %v418 = vadd.f32 %v416, %v417
    %v419 = vrot.slane %v418, 1
    %v420 = vadd.f32 %v418, %v419
    %v421 = vadd.f32 %v376, %v384
    %v422 = vadd.f32 %v421, %v392
    %v423 = vadd.f32 %v422, %v400
    %v424 = vrot.slane %v423, 4
    %v425 = vadd.f32 %v423, %v424
    %v426 = vrot.slane %v425, 2
    %v427 = vadd.f32 %v425, %v426
    %v428 = vrot.slane %v427, 1
    %v429 = vadd.f32 %v427, %v428
    %v430 = vadd.f32 %v378, %v386
    %v431 = vadd.f32 %v430, %v394
    %v432 = vadd.f32 %v431, %v402
    %v433 = vrot.slane %v432, 4
    %v434 = vadd.f32 %v432, %v433
    %v435 = vrot.slane %v434, 2
    %v436 = vadd.f32 %v434, %v435
    %v437 = vrot.slane %v436, 1
    %v438 = vadd.f32 %v436, %v437
    %v439 = vrcp.pop %v411
    %v440 = vmul.f32 1.0, %v439
    %v441 = vrcp.pop %v420
    %v442 = vmul.f32 1.0, %v441
    %v443 = vrcp.pop %v429
    %v444 = vmul.f32 1.0, %v443
    %v445 = vrcp.pop %v438
    %v446 = vmul.f32 1.0, %v445
    %v447 = vmul.f32 %v372, %v440
    %v448 = vmul.f32 %v374, %v442
    %v449 = vmul.f32 %v376, %v444
    %v450 = vmul.f32 %v378, %v446
    %v451 = vmul.f32 %v380, %v440
    %v452 = vmul.f32 %v382, %v442
    %v453 = vmul.f32 %v384, %v444
    %v454 = vmul.f32 %v386, %v446
    %v455 = vmul.f32 %v388, %v440
    %v456 = vmul.f32 %v390, %v442
    %v457 = vmul.f32 %v392, %v444
    %v458 = vmul.f32 %v394, %v446
    %v459 = vmul.f32 %v396, %v440
    %v460 = vmul.f32 %v398, %v442
    %v461 = vmul.f32 %v400, %v444
    %v462 = vmul.f32 %v402, %v446
    %463 = vst [vmem:[#allocation2] sm:$0xff] %v447
    %464 = vst [vmem:[#allocation2 + $0x8] sm:$0xff] %v448
    %465 = vst [vmem:[#allocation2 + $0x10] sm:$0xff] %v449
    %466 = vst [vmem:[#allocation2 + $0x18] sm:$0xff] %v450
    %467 = vst [vmem:[#allocation2 + $0x20] sm:$0xff] %v451
    %468 = vst [vmem:[#allocation2 + $0x28] sm:$0xff] %v452
    %469 = vst [vmem:[#allocation2 + $0x30] sm:$0xff] %v453
    %470 = vst [vmem:[#allocation2 + $0x38] sm:$0xff] %v454
    %471 = vst [vmem:[#allocation2 + $0x40] sm:$0xff] %v455
    %472 = vst [vmem:[#allocation2 + $0x48] sm:$0xff] %v456
    %473 = vst [vmem:[#allocation2 + $0x50] sm:$0xff] %v457
    %474 = vst [vmem:[#allocation2 + $0x58] sm:$0xff] %v458
    %475 = vst [vmem:[#allocation2 + $0x60] sm:$0xff] %v459
    %476 = vst [vmem:[#allocation2 + $0x68] sm:$0xff] %v460
    %477 = vst [vmem:[#allocation2 + $0x70] sm:$0xff] %v461
    %478 = vst [vmem:[#allocation2 + $0x78] sm:$0xff] %v462
    %479 = vxpose.xlu0.b32.start [1/16] %v23, 128
    %480 = vxpose.xlu0.b32.cont [2/16] %v24, 128
    %481 = vxpose.xlu0.b32.cont [3/16] %v25, 128
    %482 = vxpose.xlu0.b32.cont [4/16] %v26, 128
    %483 = vxpose.xlu0.b32.cont [5/16] 0.0, 128
    %484 = vxpose.xlu0.b32.cont [6/16] 0.0, 128
    %485 = vxpose.xlu0.b32.cont [7/16] 0.0, 128
    %486 = vxpose.xlu0.b32.cont [8/16] 0.0, 128
    %487 = vxpose.xlu0.b32.cont [9/16] 0.0, 128
    %488 = vxpose.xlu0.b32.cont [10/16] 0.0, 128
    %489 = vxpose.xlu0.b32.cont [11/16] 0.0, 128
    %490 = vxpose.xlu0.b32.cont [12/16] 0.0, 128
    %491 = vxpose.xlu0.b32.cont [13/16] 0.0, 128
    %492 = vxpose.xlu0.b32.cont [14/16] 0.0, 128
    %493 = vxpose.xlu0.b32.cont [15/16] 0.0, 128
    %494 = vxpose.xlu0.b32.end [16/16] 0.0, 128
    %v495 = vpop.trf.xlu0
    %v496 = vpop.trf.xlu0
    %v497 = vpop.trf.xlu0
    %v498 = vpop.trf.xlu0
    %v499 = vpop.trf.xlu0
    %v500 = vpop.trf.xlu0
    %v501 = vpop.trf.xlu0
    %v502 = vpop.trf.xlu0
    %v503 = vpop.trf.xlu0
    %v504 = vpop.trf.xlu0
    %v505 = vpop.trf.xlu0
    %v506 = vpop.trf.xlu0
    %v507 = vpop.trf.xlu0
    %v508 = vpop.trf.xlu0
    %v509 = vpop.trf.xlu0
    %v510 = vpop.trf.xlu0
    %vm511 = vcmask 261120
    %v513 = vsel %vm511, %v495, 0
    %515 = vmatprep.subr.mxu0 0.0
    %516 = vmatpush1.msra.mxu0 0.0
    %517 = vmatprep.subr.mxu0 0.0
    %518 = vmatpush1.msra.mxu0 0.0
    %519 = vmatprep.subr.mxu0 0.0
    %520 = vmatpush1.msra.mxu0 0.0
    %521 = vmatprep.subr.mxu0 0.0
    %522 = vmatpush1.msra.mxu0 0.0
    %523 = vmatprep.subr.mxu0 0.0
    %524 = vmatpush1.msra.mxu0 0.0
    %525 = vmatprep.subr.mxu0 0.0
    %526 = vmatpush1.msra.mxu0 0.0
    %527 = vmatprep.subr.mxu0 0.0
    %528 = vmatpush1.msra.mxu0 0.0
    %529 = vmatprep.subr.mxu0 0.0
    %530 = vmatpush1.msra.mxu0 0.0
    %531 = vmatprep.subr.mxu0 0.0
    %532 = vmatpush1.msra.mxu0 0.0
    %533 = vmatprep.subr.mxu0 0.0
    %534 = vmatpush1.msra.mxu0 0.0
    %535 = vmatprep.subr.mxu0 0.0
    %536 = vmatpush1.msra.mxu0 0.0
    %537 = vmatprep.subr.mxu0 0.0
    %538 = vmatpush1.msra.mxu0 0.0
    %539 = vmatprep.subr.mxu0 %v460
    %540 = vmatpush1.msra.mxu0 %v459
    %541 = vmatprep.subr.mxu0 %v456
    %542 = vmatpush1.msra.mxu0 %v455
    %543 = vmatprep.subr.mxu0 %v452
    %544 = vmatpush1.msra.mxu0 %v451
    %545 = vmatprep.subr.mxu0 %v448
    %546 = vmatpush1.msra.mxu0 %v447
    %547 = vmatprep.subr.mxu0 0.0
    %548 = vmatpush2.msra.mxu0 0.0
    %549 = vmatprep.subr.mxu0 0.0
    %550 = vmatpush2.msra.mxu0 0.0
    %551 = vmatprep.subr.mxu0 0.0
    %552 = vmatpush2.msra.mxu0 0.0
    %553 = vmatprep.subr.mxu0 0.0
    %554 = vmatpush2.msra.mxu0 0.0
    %555 = vmatprep.subr.mxu0 0.0
    %556 = vmatpush2.msra.mxu0 0.0
    %557 = vmatprep.subr.mxu0 0.0
    %558 = vmatpush2.msra.mxu0 0.0
    %559 = vmatprep.subr.mxu0 0.0
    %560 = vmatpush2.msra.mxu0 0.0
    %561 = vmatprep.subr.mxu0 0.0
    %562 = vmatpush2.msra.mxu0 0.0
    %563 = vmatprep.subr.mxu0 0.0
    %564 = vmatpush2.msra.mxu0 0.0
    %565 = vmatprep.subr.mxu0 0.0
    %566 = vmatpush2.msra.mxu0 0.0
    %567 = vmatprep.subr.mxu0 0.0
    %568 = vmatpush2.msra.mxu0 0.0
    %569 = vmatprep.subr.mxu0 0.0
    %570 = vmatpush2.msra.mxu0 0.0
    %571 = vmatprep.subr.mxu0 0.0
    %572 = vmatpush2.msra.mxu0 0.0
    %573 = vmatprep.subr.mxu0 0.0
    %574 = vmatpush2.msra.mxu0 0.0
    %575 = vmatprep.subr.mxu0 0.0
    %576 = vmatpush2.msra.mxu0 0.0
    %577 = vmatprep.subr.mxu0 0.0
    %578 = vmatpush2.msra.mxu0 0.0
    %579 = vmatprep.mubr.f32.mxu0 0.0
    %580 = vmatmul.mubr.f32.gmra.mxu0 %v513
    %v581 = vpop.f32.mrf.mxu0
    %v582 = vadd.f32 0.0, %v581
    %v583 = vpop.f32.mrf.mxu0
    %v584 = vadd.f32 0.0, %v583
    %585 = vdwg.mxu0
    %586 = vmatprep.subr.mxu0 0.0
    %587 = vmatpush1.msra.mxu0 0.0
    %588 = vmatprep.subr.mxu0 0.0
    %589 = vmatpush1.msra.mxu0 0.0
    %590 = vmatprep.subr.mxu0 0.0
    %591 = vmatpush1.msra.mxu0 0.0
    %592 = vmatprep.subr.mxu0 0.0
    %593 = vmatpush1.msra.mxu0 0.0
    %594 = vmatprep.subr.mxu0 0.0
    %595 = vmatpush1.msra.mxu0 0.0
    %596 = vmatprep.subr.mxu0 0.0
    %597 = vmatpush1.msra.mxu0 0.0
    %598 = vmatprep.subr.mxu0 0.0
    %599 = vmatpush1.msra.mxu0 0.0
    %600 = vmatprep.subr.mxu0 0.0
    %601 = vmatpush1.msra.mxu0 0.0
    %602 = vmatprep.subr.mxu0 0.0
    %603 = vmatpush1.msra.mxu0 0.0
    %604 = vmatprep.subr.mxu0 0.0
    %605 = vmatpush1.msra.mxu0 0.0
    %606 = vmatprep.subr.mxu0 0.0
    %607 = vmatpush1.msra.mxu0 0.0
    %608 = vmatprep.subr.mxu0 0.0
    %609 = vmatpush1.msra.mxu0 0.0
    %610 = vmatprep.subr.mxu0 %v462
    %611 = vmatpush1.msra.mxu0 %v461
    %612 = vmatprep.subr.mxu0 %v458
    %613 = vmatpush1.msra.mxu0 %v457
    %614 = vmatprep.subr.mxu0 %v454
    %615 = vmatpush1.msra.mxu0 %v453
    %616 = vmatprep.subr.mxu0 %v450
    %617 = vmatpush1.msra.mxu0 %v449
    %618 = vmatprep.subr.mxu0 0.0
    %619 = vmatpush2.msra.mxu0 0.0
    %620 = vmatprep.subr.mxu0 0.0
    %621 = vmatpush2.msra.mxu0 0.0
    %622 = vmatprep.subr.mxu0 0.0
    %623 = vmatpush2.msra.mxu0 0.0
    %624 = vmatprep.subr.mxu0 0.0
    %625 = vmatpush2.msra.mxu0 0.0
    %626 = vmatprep.subr.mxu0 0.0
    %627 = vmatpush2.msra.mxu0 0.0
    %628 = vmatprep.subr.mxu0 0.0
    %629 = vmatpush2.msra.mxu0 0.0
    %630 = vmatprep.subr.mxu0 0.0
    %631 = vmatpush2.msra.mxu0 0.0
    %632 = vmatprep.subr.mxu0 0.0
    %633 = vmatpush2.msra.mxu0 0.0
    %634 = vmatprep.subr.mxu0 0.0
    %635 = vmatpush2.msra.mxu0 0.0
    %636 = vmatprep.subr.mxu0 0.0
    %637 = vmatpush2.msra.mxu0 0.0
    %638 = vmatprep.subr.mxu0 0.0
    %639 = vmatpush2.msra.mxu0 0.0
    %640 = vmatprep.subr.mxu0 0.0
    %641 = vmatpush2.msra.mxu0 0.0
    %642 = vmatprep.subr.mxu0 0.0
    %643 = vmatpush2.msra.mxu0 0.0
    %644 = vmatprep.subr.mxu0 0.0
    %645 = vmatpush2.msra.mxu0 0.0
    %646 = vmatprep.subr.mxu0 0.0
    %647 = vmatpush2.msra.mxu0 0.0
    %648 = vmatprep.subr.mxu0 0.0
    %649 = vmatpush2.msra.mxu0 0.0
    %650 = vmatprep.mubr.f32.mxu0 0.0
    %651 = vmatmul.mubr.f32.gmra.mxu0 %v513
    %v652 = vpop.f32.mrf.mxu0
    %v653 = vadd.f32 0.0, %v652
    %v654 = vpop.f32.mrf.mxu0
    %v655 = vadd.f32 0.0, %v654
    %656 = vdwg.mxu0
    %v661 = vcombine.low %v582, %v584
    %v662 = vcombine.low %v653, %v655
    %665 = vst [vmem:[%s5] sm:$0xff] %v661
    %666 = vst [vmem:[%s5 + $0x8] sm:$0xff] %v662
    %v667 = vadd.f32 %v447, %v448
    %v668 = vadd.f32 %v667, %v449
    %v669 = vadd.f32 %v668, %v450
    %670 = vadd.xlane.f32.xlu0 %v669
    %v671 = vpop.xlane.xlu0 %670
    %v672 = vadd.f32 %v451, %v452
    %v673 = vadd.f32 %v672, %v453
    %v674 = vadd.f32 %v673, %v454
    %675 = vadd.xlane.f32.xlu0 %v674
    %v676 = vpop.xlane.xlu0 %675
    %v677 = vadd.f32 %v455, %v456
    %v678 = vadd.f32 %v677, %v457
    %v679 = vadd.f32 %v678, %v458
    %680 = vadd.xlane.f32.xlu0 %v679
    %v681 = vpop.xlane.xlu0 %680
    %v682 = vadd.f32 %v459, %v460
    %v683 = vadd.f32 %v682, %v461
    %v684 = vadd.f32 %v683, %v462
    %685 = vadd.xlane.f32.xlu0 %v684
    %v686 = vpop.xlane.xlu0 %685
    %vm687 = vcmask 7168
    %688 = vst.msk [vmem:[%s6] sm:$0xff] %vm687, %v671
    %689 = vst.msk [vmem:[%s6 + $0x8] sm:$0xff] %vm687, %v676
    %690 = vst.msk [vmem:[%s6 + $0x10] sm:$0xff] %vm687, %v681
    %691 = vst.msk [vmem:[%s6 + $0x18] sm:$0xff] %vm687, %v686
    // Predicated region
    $region18: #{soft_quantizer_forward.1} parent=1 // pred_check
      _
    $region19: #{soft_quantizer_forward.1} parent=1 // pred_check_branch
      %693 = sbr.rel (0) target = $region21
    $region20: #{soft_quantizer_forward.1} parent=1 // pred_region
      %s695 = ssub.s32 2048, 2048
      %696 = vsyncadd [#allocation3], %s695
      %s697 = sshll.u32 [#allocation2], 4
      %s698 = int_to_ptr.vmem [resolvable:$true] %s697
      %703 = dma.vmem_to_hbm [thread:$0]  %s698, 2048, %s4, [#allocation3], 512, 512, 32
    $region21: #{soft_quantizer_forward.1} parent=1 // pred_fallthru
      _
    // Predicated region
    $region22: #{soft_quantizer_forward.1} parent=1 // pred_check
      _
    $region23: #{soft_quantizer_forward.1} parent=1 // pred_check_branch
      %705 = sbr.rel (0) target = $region25
    $region24: #{soft_quantizer_forward.1} parent=1 // pred_region
      _
    $region25: #{soft_quantizer_forward.1} parent=1 // pred_fallthru
      _
    // Predicated region
    $region26: #{soft_quantizer_forward.1} parent=1 // pred_check
      _
    $region27: #{soft_quantizer_forward.1} parent=1 // pred_check_branch
      %707 = sbr.rel (0) target = $region29
    $region28: #{soft_quantizer_forward.1} parent=1 // pred_region
      _
    $region29: #{soft_quantizer_forward.1} parent=1 // pred_fallthru
      _
    // Predicated region
    $region30: #{soft_quantizer_forward.1} parent=1 // pred_check
      _
    $region31: #{soft_quantizer_forward.1} parent=1 // pred_check_branch
      %709 = sbr.rel (0) target = $region33
    $region32: #{soft_quantizer_forward.1} parent=1 // pred_region
      %710 = dma.done [#allocation3], 2048
    $region33: #{soft_quantizer_forward.1} parent=1 // pred_fallthru
      _
    // Predicated region
    $region34: #{soft_quantizer_forward.1} parent=1 // pred_check
      _
    $region35: #{soft_quantizer_forward.1} parent=1 // pred_check_branch
      %712 = sbr.rel (0) target = $region37
    $region36: #{soft_quantizer_forward.1} parent=1 // pred_region
      _
    $region37: #{soft_quantizer_forward.1} parent=1 // pred_fallthru
      _
    // Predicated region
    $region38: #{soft_quantizer_forward.1} parent=1 // pred_check
      _
    $region39: #{soft_quantizer_forward.1} parent=1 // pred_check_branch
      %714 = sbr.rel (0) target = $region41
    $region40: #{soft_quantizer_forward.1} parent=1 // pred_region
      _
    $region41: #{soft_quantizer_forward.1} parent=1 // pred_fallthru
      _
    %715 = vsyncpa [#allocation3], 1

</llo_original>
